<compile_context>
chip_gen: v5e
topology: v5e:2x2
jax: 0.10.0
libtpu: 0.0.40
codegen_flags: <defaults>
</compile_context>

<pallas_src>
import jax
import jax.numpy as jnp
from jax.experimental import pallas as pl
from jax.experimental.pallas import tpu as pltpu

EXPANSION = 4                      # Bottleneck-style block => 512 * 4 = 2048 features
IN_FEATURES = 512 * EXPANSION
NUM_CLASSES = 10
N_PAD = 128                        # lane-dense padded class dim
POOL = 4                           # nn.AvgPool2d(4)


def head_kernel(x_ref, w_ref, b_ref, o_ref):
    """x_ref: [TM, S, C] (S = 4*4 pooling window)
       w_ref: [N_PAD, C]  PyTorch [out, in] layout, rows zero-padded
       b_ref: [1, N_PAD]
       o_ref: [TM, N_PAD]
    """
    # AvgPool2d(4) on the 4x4 map == global mean over the S axis; reducing the
    # sublane axis keeps the C (and later class) dims lane-dense.
    pooled = jnp.mean(x_ref[...], axis=1)                       # [TM, C] f32
    # out = pooled @ W.T without ever materializing W.T.
    acc = jax.lax.dot_general(
        pooled, w_ref[...],
        dimension_numbers=(((1,), (1,)), ((), ())),
        preferred_element_type=jnp.float32,
    )                                                           # [TM, N_PAD]
    o_ref[...] = (acc + b_ref[...]).astype(o_ref.dtype)


def prepare_params(weight, bias):
    """One-time prep: zero-pad the class dim to a lane-dense 128 (no transpose)."""
    n, k = weight.shape
    w_pad = jnp.zeros((N_PAD, k), weight.dtype).at[:n, :].set(weight)
    b_pad = jnp.zeros((1, N_PAD), bias.dtype).at[0, :n].set(bias)
    # TODO(synk): optionally store w_pad in bfloat16 (f32 accumulation stays) to
    # halve weight HBM bytes; kept f32 to preserve the module's exact numerics.
    return w_pad, b_pad


@jax.jit
def resnet_head_forward(x, w_pad, b_pad):
    """Fused pooll -> viewl -> linear head.

    x: [B, C, 4, 4] layer4 output; returns logits [B, NUM_CLASSES].
    """
    B, C, H, W = x.shape
    assert H == POOL and W == POOL, "head expects the 4x4 layer4 output"
    S = H * W

    # Layout plumbing (fused under jit): [B, C, 4, 4] -> [B, S, C] so the pool
    # is a cheap sublane reduction and C is lane-dense in VMEM.
    x_sc = jnp.transpose(x.reshape(B, C, S), (0, 2, 1))

    # Batch tiling: whole batch in one block when small/ragged, 64-row tiles
    # otherwise (keeps double-buffered x tiles well inside the 32 MiB scoped
    # VMEM default on every generation, including v7x's 64 MiB physical VMEM).
    tm = 64 if (B >= 64 and B % 64 == 0) else B
    grid = (B // tm,)

    flops = 2 * B * C * N_PAD + B * S * C
    bytes_accessed = (B * S * C + N_PAD * C + N_PAD + B * N_PAD) * 4

    out_pad = pl.pallas_call(
        head_kernel,
        out_shape=jax.ShapeDtypeStruct((B, N_PAD), jnp.float32),
        grid=grid,
        in_specs=[
            pl.BlockSpec((tm, S, C), lambda i: (i, 0, 0)),
            pl.BlockSpec((N_PAD, C), lambda i: (0, 0)),   # weight resident across grid
            pl.BlockSpec((1, N_PAD), lambda i: (0, 0)),
        ],
        out_specs=pl.BlockSpec((tm, N_PAD), lambda i: (i, 0)),
        compiler_params=pltpu.CompilerParams(
            dimension_semantics=("parallel",),
        ),
        cost_estimate=pl.CostEstimate(
            flops=flops, transcendentals=0, bytes_accessed=bytes_accessed),
    )(x_sc, w_pad, b_pad)

    return out_pad[:, :NUM_CLASSES]


if __name__ == "__main__":
    key = jax.random.PRNGKey(0)
    kx, kw, kb = jax.random.split(key, 3)

    B, C, H, W = 2, IN_FEATURES, 4, 4

    # PyTorch nn.Linear default init: U(-1/sqrt(in_features), 1/sqrt(in_features)).
    bound = 1.0 / (IN_FEATURES ** 0.5)
    weight = jax.random.uniform(kw, (NUM_CLASSES, IN_FEATURES),
                                minval=-bound, maxval=bound, dtype=jnp.float32)
    bias = jax.random.uniform(kb, (NUM_CLASSES,),
                              minval=-bound, maxval=bound, dtype=jnp.float32)
    # Stand-in for the layer4 activation (conv backbone depends on an
    # unspecified `block` class, not translated here).
    x = jax.random.normal(kx, (B, C, H, W), dtype=jnp.float32)

    w_pad, b_pad = prepare_params(weight, bias)
    out = resnet_head_forward(x, w_pad, b_pad)
    out = jax.block_until_ready(out)

    # Reference: AvgPool2d(4) -> view -> Linear, plain JAX.
    pooled_ref = x.reshape(B, C, H * W).mean(axis=-1)
    ref = pooled_ref @ weight.T + bias

    assert out.shape == (B, NUM_CLASSES)
    assert jnp.allclose(out, ref, atol=1e-5, rtol=1e-5)
    print("KERNEL_OK")
</pallas_src>

<mosaic_0001>
module attributes {stable_mosaic.version = 11 : i64} {
  func.func @head_kernel(%arg0: i32, %arg1: memref<2x16x2048xf32, #tpu.memory_space<vmem>>, %arg2: memref<128x2048xf32, #tpu.memory_space<vmem>>, %arg3: memref<1x128xf32, #tpu.memory_space<vmem>>, %arg4: memref<2x128xf32, #tpu.memory_space<vmem>>) attributes {dimension_semantics = [#tpu.dimension_semantics<parallel>], iteration_bounds = array<i64: 1>, scalar_prefetch = 0 : i64, scratch_operands = 0 : i64, tpu.core_type = #tpu.core_type<tc>, window_params = [{transform_indices = @transform_0, window_bounds = array<i64: 2, 16, 2048>}, {pipeline_mode = #tpu.pipeline_mode<synchronous>, transform_indices = @transform_1, window_bounds = array<i64: 128, 2048>}, {pipeline_mode = #tpu.pipeline_mode<synchronous>, transform_indices = @transform_2, window_bounds = array<i64: 1, 128>}, {transform_indices = @transform_3, window_bounds = array<i64: 2, 128>}]} {
    %c0 = arith.constant 0 : index
    %c0_0 = arith.constant 0 : index
    %c0_1 = arith.constant 0 : index
    %0 = vector.load %arg1[%c0, %c0_0, %c0_1] : memref<2x16x2048xf32, #tpu.memory_space<vmem>>, vector<2x16x2048xf32>
    %cst = arith.constant dense<0.000000e+00> : vector<2x2048xf32>
    %1 = vector.multi_reduction <add>, %0, %cst [1] : vector<2x16x2048xf32> to vector<2x2048xf32>
    %cst_2 = arith.constant 1.600000e+01 : f32
    %2 = vector.broadcast %cst_2 : f32 to vector<2x2048xf32>
    %3 = arith.divf %1, %2 : vector<2x2048xf32>
    %c0_3 = arith.constant 0 : index
    %c0_4 = arith.constant 0 : index
    %4 = vector.load %arg2[%c0_3, %c0_4] : memref<128x2048xf32, #tpu.memory_space<vmem>>, vector<128x2048xf32>
    %cst_5 = arith.constant dense<0.000000e+00> : vector<2x128xf32>
    %5 = tpu.matmul %3, %4, %cst_5 {dimension_numbers = #tpu.dot_dimension_numbers<[1], [1], [0], [0], [0, 0, 1, 0], [], []>} : vector<2x2048xf32>, vector<128x2048xf32>, vector<2x128xf32> -> vector<2x128xf32>
    %c0_6 = arith.constant 0 : index
    %c0_7 = arith.constant 0 : index
    %6 = vector.load %arg3[%c0_6, %c0_7] : memref<1x128xf32, #tpu.memory_space<vmem>>, vector<1x128xf32>
    %7 = vector.broadcast %6 : vector<1x128xf32> to vector<2x128xf32>
    %8 = arith.addf %5, %7 : vector<2x128xf32>
    %c0_8 = arith.constant 0 : index
    %c0_9 = arith.constant 0 : index
    %9 = vector.load %arg4[%c0_8, %c0_9] : memref<2x128xf32, #tpu.memory_space<vmem>>, vector<2x128xf32>
    tpu.vector_store %arg4[%c0_8, %c0_9], %8 {strides = array<i32>} : memref<2x128xf32, #tpu.memory_space<vmem>>, vector<2x128xf32>,
    return
  }
  func.func @transform_0(%arg0: i32) -> (i32, i32, i32) {
    %c0_i32 = arith.constant 0 : i32
    %c0_i32_0 = arith.constant 0 : i32
    %c0_i32_1 = arith.constant 0 : i32
    return %arg0, %c0_i32, %c0_i32_0 : i32, i32, i32
  }
  func.func @transform_1(%arg0: i32) -> (i32, i32) {
    %c0_i32 = arith.constant 0 : i32
    %c0_i32_0 = arith.constant 0 : i32
    %c0_i32_1 = arith.constant 0 : i32
    return %c0_i32, %c0_i32_0 : i32, i32
  }
  func.func @transform_2(%arg0: i32) -> (i32, i32) {
    %c0_i32 = arith.constant 0 : i32
    %c0_i32_0 = arith.constant 0 : i32
    %c0_i32_1 = arith.constant 0 : i32
    return %c0_i32, %c0_i32_0 : i32, i32
  }
  func.func @transform_3(%arg0: i32) -> (i32, i32) {
    %c0_i32 = arith.constant 0 : i32
    %c0_i32_0 = arith.constant 0 : i32
    return %arg0, %c0_i32 : i32, i32
  }
}

</mosaic_0001>

<llo_original>
// kernel: resnet_head_forward.1
$region0: #{resnet_head_forward.1}
  #allocation0 [shape = 'u32[]', space=smem, size = 0x4, offset = 0x4, fixed_abs, tag = 'smem constant byte address 0x4 - core index']
  #allocation1 [shape = 'u32[72,128]{1,0:T(1,128)}', space=vmem, size = 0x9000, scoped, tag = 'internal scratch']
  %s0 = inlined_call_operand.vmem [shape: f32[2,16,2048], index: 0, kind: input, shape index: {}]
  %s1 = inlined_call_operand.hbm [shape: f32[128,2048], index: 1, kind: input, shape index: {}]
  %s2 = inlined_call_operand.vmem [shape: f32[1,128], index: 2, kind: input, shape index: {}]
  %s3 = inlined_call_operand.hbm [shape: f32[2,128], index: 3, kind: output, shape index: {}]
  %s4 = sld [smem:[#allocation0]]
  $region26: #{resnet_head_forward.1} parent=0
    _
  %s6 = ssub.s32 1, %s4
  %s7 = scalar_select 0, %s6, %s4
  $region1: #{resnet_head_forward.1} parent=0
    #allocation2 [shape = 'u8[1048576]{0}', space=vmem, size = 0x100000, scoped, tag = 'input window, operand 1, single buffered']
    #allocation3 [shape = 's32[1]{0}', space=sflag, size = 0x4, scoped, tag = 'scoped memory for resnet_head_forward.1']
    #allocation4 [shape = 's32[1]{0}', space=sflag, size = 0x4, scoped, tag = 'scoped memory for resnet_head_forward.1']
    #allocation5 [shape = 'u8[1024]{0}', space=vmem, size = 0x400, scoped, tag = 'output window, operand 0, single buffered']
    %8 = vsyncpa [#allocation3], 0
    %9 = vsyncpa [#allocation4], 0
    // Predicated region
    $region2: #{resnet_head_forward.1} parent=1 // pred_check
      _
    $region3: #{resnet_head_forward.1} parent=1 // pred_check_branch
      %11 = sbr.rel (0) target = $region5
    $region4: #{resnet_head_forward.1} parent=1 // pred_region
      _
    $region5: #{resnet_head_forward.1} parent=1 // pred_fallthru
      _
    // Predicated region
    $region6: #{resnet_head_forward.1} parent=1 // pred_check
      _
    $region7: #{resnet_head_forward.1} parent=1 // pred_check_branch
      %13 = sbr.rel (0) target = $region9
    $region8: #{resnet_head_forward.1} parent=1 // pred_region
      %15 = vsyncadd [#allocation3], 0
      %s16 = sshll.u32 %s1, 4
      %s17 = int_to_ptr.hbm [resolvable:$true] %s16
      %s18 = sshll.u32 [#allocation2], 4
      %s19 = int_to_ptr.vmem [resolvable:$true] %s18
      %24 = dma.hbm_to_vmem [thread:$0]  %s17, 32768, %s19, [#allocation3], 2048, 2048, 128
    $region9: #{resnet_head_forward.1} parent=1 // pred_fallthru
      _
    // Predicated region
    $region10: #{resnet_head_forward.1} parent=1 // pred_check
      _
    $region11: #{resnet_head_forward.1} parent=1 // pred_check_branch
      %26 = sbr.rel (0) target = $region13
    $region12: #{resnet_head_forward.1} parent=1 // pred_region
      _
    $region13: #{resnet_head_forward.1} parent=1 // pred_fallthru
      _
    // Predicated region
    $region14: #{resnet_head_forward.1} parent=1 // pred_check
      _
    $region15: #{resnet_head_forward.1} parent=1 // pred_check_branch
      %28 = sbr.rel (0) target = $region17
    $region16: #{resnet_head_forward.1} parent=1 // pred_region
      %30 = dma.done [#allocation3], 32768
    $region17: #{resnet_head_forward.1} parent=1 // pred_fallthru
      _
    %v31 = vld [vmem:[%s0] sm:$0xff]
    %v32 = vld [vmem:[%s0 + $0x8] sm:$0xff]
    %v33 = vld [vmem:[%s0 + $0x10] sm:$0xff]
    %v34 = vld [vmem:[%s0 + $0x18] sm:$0xff]
    %v35 = vld [vmem:[%s0 + $0x20] sm:$0xff]
    %v36 = vld [vmem:[%s0 + $0x28] sm:$0xff]
    %v37 = vld [vmem:[%s0 + $0x30] sm:$0xff]
    %v38 = vld [vmem:[%s0 + $0x38] sm:$0xff]
    %v39 = vld [vmem:[%s0 + $0x40] sm:$0xff]
    %v40 = vld [vmem:[%s0 + $0x48] sm:$0xff]
    %v41 = vld [vmem:[%s0 + $0x50] sm:$0xff]
    %v42 = vld [vmem:[%s0 + $0x58] sm:$0xff]
    %v43 = vld [vmem:[%s0 + $0x60] sm:$0xff]
    %v44 = vld [vmem:[%s0 + $0x68] sm:$0xff]
    %v45 = vld [vmem:[%s0 + $0x70] sm:$0xff]
    %v46 = vld [vmem:[%s0 + $0x78] sm:$0xff]
    %v47 = vld [vmem:[%s0 + $0x80] sm:$0xff]
    %v48 = vld [vmem:[%s0 + $0x88] sm:$0xff]
    %v49 = vld [vmem:[%s0 + $0x90] sm:$0xff]
    %v50 = vld [vmem:[%s0 + $0x98] sm:$0xff]
    %v51 = vld [vmem:[%s0 + $0xa0] sm:$0xff]
    %v52 = vld [vmem:[%s0 + $0xa8] sm:$0xff]
    %v53 = vld [vmem:[%s0 + $0xb0] sm:$0xff]
    %v54 = vld [vmem:[%s0 + $0xb8] sm:$0xff]
    %v55 = vld [vmem:[%s0 + $0xc0] sm:$0xff]
    %v56 = vld [vmem:[%s0 + $0xc8] sm:$0xff]
    %v57 = vld [vmem:[%s0 + $0xd0] sm:$0xff]
    %v58 = vld [vmem:[%s0 + $0xd8] sm:$0xff]
    %v59 = vld [vmem:[%s0 + $0xe0] sm:$0xff]
    %v60 = vld [vmem:[%s0 + $0xe8] sm:$0xff]
    %v61 = vld [vmem:[%s0 + $0xf0] sm:$0xff]
    %v62 = vld [vmem:[%s0 + $0xf8] sm:$0xff]
    %v63 = vld [vmem:[%s0 + $0x100] sm:$0xff]
    %v64 = vld [vmem:[%s0 + $0x108] sm:$0xff]
    %v65 = vld [vmem:[%s0 + $0x110] sm:$0xff]
    %v66 = vld [vmem:[%s0 + $0x118] sm:$0xff]
    %v67 = vld [vmem:[%s0 + $0x120] sm:$0xff]
    %v68 = vld [vmem:[%s0 + $0x128] sm:$0xff]
    %v69 = vld [vmem:[%s0 + $0x130] sm:$0xff]
    %v70 = vld [vmem:[%s0 + $0x138] sm:$0xff]
    %v71 = vld [vmem:[%s0 + $0x140] sm:$0xff]
    %v72 = vld [vmem:[%s0 + $0x148] sm:$0xff]
    %v73 = vld [vmem:[%s0 + $0x150] sm:$0xff]
    %v74 = vld [vmem:[%s0 + $0x158] sm:$0xff]
    %v75 = vld [vmem:[%s0 + $0x160] sm:$0xff]
    %v76 = vld [vmem:[%s0 + $0x168] sm:$0xff]
    %v77 = vld [vmem:[%s0 + $0x170] sm:$0xff]
    %v78 = vld [vmem:[%s0 + $0x178] sm:$0xff]
    %v79 = vld [vmem:[%s0 + $0x180] sm:$0xff]
    %v80 = vld [vmem:[%s0 + $0x188] sm:$0xff]
    %v81 = vld [vmem:[%s0 + $0x190] sm:$0xff]
    %v82 = vld [vmem:[%s0 + $0x198] sm:$0xff]
    %v83 = vld [vmem:[%s0 + $0x1a0] sm:$0xff]
    %v84 = vld [vmem:[%s0 + $0x1a8] sm:$0xff]
    %v85 = vld [vmem:[%s0 + $0x1b0] sm:$0xff]
    %v86 = vld [vmem:[%s0 + $0x1b8] sm:$0xff]
    %v87 = vld [vmem:[%s0 + $0x1c0] sm:$0xff]
    %v88 = vld [vmem:[%s0 + $0x1c8] sm:$0xff]
    %v89 = vld [vmem:[%s0 + $0x1d0] sm:$0xff]
    %v90 = vld [vmem:[%s0 + $0x1d8] sm:$0xff]
    %v91 = vld [vmem:[%s0 + $0x1e0] sm:$0xff]
    %v92 = vld [vmem:[%s0 + $0x1e8] sm:$0xff]
    %v93 = vld [vmem:[%s0 + $0x1f0] sm:$0xff]
    %v94 = vld [vmem:[%s0 + $0x1f8] sm:$0xff]
    %v95 = vadd.f32 %v31, %v47
    %v96 = vrot.slane %v95, 4
    %v97 = vadd.f32 %v95, %v96
    %v98 = vrot.slane %v97, 2
    %v99 = vadd.f32 %v97, %v98
    %v100 = vrot.slane %v99, 1
    %v101 = vadd.f32 %v99, %v100
    %v102 = vadd.f32 %v32, %v48
    %v103 = vrot.slane %v102, 4
    %v104 = vadd.f32 %v102, %v103
    %v105 = vrot.slane %v104, 2
    %v106 = vadd.f32 %v104, %v105
    %v107 = vrot.slane %v106, 1
    %v108 = vadd.f32 %v106, %v107
    %v109 = vadd.f32 %v33, %v49
    %v110 = vrot.slane %v109, 4
    %v111 = vadd.f32 %v109, %v110
    %v112 = vrot.slane %v111, 2
    %v113 = vadd.f32 %v111, %v112
    %v114 = vrot.slane %v113, 1
    %v115 = vadd.f32 %v113, %v114
    %v116 = vadd.f32 %v34, %v50
    %v117 = vrot.slane %v116, 4
    %v118 = vadd.f32 %v116, %v117
    %v119 = vrot.slane %v118, 2
    %v120 = vadd.f32 %v118, %v119
    %v121 = vrot.slane %v120, 1
    %v122 = vadd.f32 %v120, %v121
    %v123 = vadd.f32 %v35, %v51
    %v124 = vrot.slane %v123, 4
    %v125 = vadd.f32 %v123, %v124
    %v126 = vrot.slane %v125, 2
    %v127 = vadd.f32 %v125, %v126
    %v128 = vrot.slane %v127, 1
    %v129 = vadd.f32 %v127, %v128
    %v130 = vadd.f32 %v36, %v52
    %v131 = vrot.slane %v130, 4
    %v132 = vadd.f32 %v130, %v131
    %v133 = vrot.slane %v132, 2
    %v134 = vadd.f32 %v132, %v133
    %v135 = vrot.slane %v134, 1
    %v136 = vadd.f32 %v134, %v135
    %v137 = vadd.f32 %v37, %v53
    %v138 = vrot.slane %v137, 4
    %v139 = vadd.f32 %v137, %v138
    %v140 = vrot.slane %v139, 2
    %v141 = vadd.f32 %v139, %v140
    %v142 = vrot.slane %v141, 1
    %v143 = vadd.f32 %v141, %v142
    %v144 = vadd.f32 %v38, %v54
    %v145 = vrot.slane %v144, 4
    %v146 = vadd.f32 %v144, %v145
    %v147 = vrot.slane %v146, 2
    %v148 = vadd.f32 %v146, %v147
    %v149 = vrot.slane %v148, 1
    %v150 = vadd.f32 %v148, %v149
    %v151 = vadd.f32 %v39, %v55
    %v152 = vrot.slane %v151, 4
    %v153 = vadd.f32 %v151, %v152
    %v154 = vrot.slane %v153, 2
    %v155 = vadd.f32 %v153, %v154
    %v156 = vrot.slane %v155, 1
    %v157 = vadd.f32 %v155, %v156
    %v158 = vadd.f32 %v40, %v56
    %v159 = vrot.slane %v158, 4
    %v160 = vadd.f32 %v158, %v159
    %v161 = vrot.slane %v160, 2
    %v162 = vadd.f32 %v160, %v161
    %v163 = vrot.slane %v162, 1
    %v164 = vadd.f32 %v162, %v163
    %v165 = vadd.f32 %v41, %v57
    %v166 = vrot.slane %v165, 4
    %v167 = vadd.f32 %v165, %v166
    %v168 = vrot.slane %v167, 2
    %v169 = vadd.f32 %v167, %v168
    %v170 = vrot.slane %v169, 1
    %v171 = vadd.f32 %v169, %v170
    %v172 = vadd.f32 %v42, %v58
    %v173 = vrot.slane %v172, 4
    %v174 = vadd.f32 %v172, %v173
    %v175 = vrot.slane %v174, 2
    %v176 = vadd.f32 %v174, %v175
    %v177 = vrot.slane %v176, 1
    %v178 = vadd.f32 %v176, %v177
    %v179 = vadd.f32 %v43, %v59
    %v180 = vrot.slane %v179, 4
    %v181 = vadd.f32 %v179, %v180
    %v182 = vrot.slane %v181, 2
    %v183 = vadd.f32 %v181, %v182
    %v184 = vrot.slane %v183, 1
    %v185 = vadd.f32 %v183, %v184
    %v186 = vadd.f32 %v44, %v60
    %v187 = vrot.slane %v186, 4
    %v188 = vadd.f32 %v186, %v187
    %v189 = vrot.slane %v188, 2
    %v190 = vadd.f32 %v188, %v189
    %v191 = vrot.slane %v190, 1
    %v192 = vadd.f32 %v190, %v191
    %v193 = vadd.f32 %v45, %v61
    %v194 = vrot.slane %v193, 4
    %v195 = vadd.f32 %v193, %v194
    %v196 = vrot.slane %v195, 2
    %v197 = vadd.f32 %v195, %v196
    %v198 = vrot.slane %v197, 1
    %v199 = vadd.f32 %v197, %v198
    %v200 = vadd.f32 %v46, %v62
    %v201 = vrot.slane %v200, 4
    %v202 = vadd.f32 %v200, %v201
    %v203 = vrot.slane %v202, 2
    %v204 = vadd.f32 %v202, %v203
    %v205 = vrot.slane %v204, 1
    %v206 = vadd.f32 %v204, %v205
    %v207 = vadd.f32 %v63, %v79
    %v208 = vrot.slane %v207, 4
    %v209 = vadd.f32 %v207, %v208
    %v210 = vrot.slane %v209, 2
    %v211 = vadd.f32 %v209, %v210
    %v212 = vrot.slane %v211, 1
    %v213 = vadd.f32 %v211, %v212
    %v214 = vadd.f32 %v64, %v80
    %v215 = vrot.slane %v214, 4
    %v216 = vadd.f32 %v214, %v215
    %v217 = vrot.slane %v216, 2
    %v218 = vadd.f32 %v216, %v217
    %v219 = vrot.slane %v218, 1
    %v220 = vadd.f32 %v218, %v219
    %v221 = vadd.f32 %v65, %v81
    %v222 = vrot.slane %v221, 4
    %v223 = vadd.f32 %v221, %v222
    %v224 = vrot.slane %v223, 2
    %v225 = vadd.f32 %v223, %v224
    %v226 = vrot.slane %v225, 1
    %v227 = vadd.f32 %v225, %v226
    %v228 = vadd.f32 %v66, %v82
    %v229 = vrot.slane %v228, 4
    %v230 = vadd.f32 %v228, %v229
    %v231 = vrot.slane %v230, 2
    %v232 = vadd.f32 %v230, %v231
    %v233 = vrot.slane %v232, 1
    %v234 = vadd.f32 %v232, %v233
    %v235 = vadd.f32 %v67, %v83
    %v236 = vrot.slane %v235, 4
    %v237 = vadd.f32 %v235, %v236
    %v238 = vrot.slane %v237, 2
    %v239 = vadd.f32 %v237, %v238
    %v240 = vrot.slane %v239, 1
    %v241 = vadd.f32 %v239, %v240
    %v242 = vadd.f32 %v68, %v84
    %v243 = vrot.slane %v242, 4
    %v244 = vadd.f32 %v242, %v243
    %v245 = vrot.slane %v244, 2
    %v246 = vadd.f32 %v244, %v245
    %v247 = vrot.slane %v246, 1
    %v248 = vadd.f32 %v246, %v247
    %v249 = vadd.f32 %v69, %v85
    %v250 = vrot.slane %v249, 4
    %v251 = vadd.f32 %v249, %v250
    %v252 = vrot.slane %v251, 2
    %v253 = vadd.f32 %v251, %v252
    %v254 = vrot.slane %v253, 1
    %v255 = vadd.f32 %v253, %v254
    %v256 = vadd.f32 %v70, %v86
    %v257 = vrot.slane %v256, 4
    %v258 = vadd.f32 %v256, %v257
    %v259 = vrot.slane %v258, 2
    %v260 = vadd.f32 %v258, %v259
    %v261 = vrot.slane %v260, 1
    %v262 = vadd.f32 %v260, %v261
    %v263 = vadd.f32 %v71, %v87
    %v264 = vrot.slane %v263, 4
    %v265 = vadd.f32 %v263, %v264
    %v266 = vrot.slane %v265, 2
    %v267 = vadd.f32 %v265, %v266
    %v268 = vrot.slane %v267, 1
    %v269 = vadd.f32 %v267, %v268
    %v270 = vadd.f32 %v72, %v88
    %v271 = vrot.slane %v270, 4
    %v272 = vadd.f32 %v270, %v271
    %v273 = vrot.slane %v272, 2
    %v274 = vadd.f32 %v272, %v273
    %v275 = vrot.slane %v274, 1
    %v276 = vadd.f32 %v274, %v275
    %v277 = vadd.f32 %v73, %v89
    %v278 = vrot.slane %v277, 4
    %v279 = vadd.f32 %v277, %v278
    %v280 = vrot.slane %v279, 2
    %v281 = vadd.f32 %v279, %v280
    %v282 = vrot.slane %v281, 1
    %v283 = vadd.f32 %v281, %v282
    %v284 = vadd.f32 %v74, %v90
    %v285 = vrot.slane %v284, 4
    %v286 = vadd.f32 %v284, %v285
    %v287 = vrot.slane %v286, 2
    %v288 = vadd.f32 %v286, %v287
    %v289 = vrot.slane %v288, 1
    %v290 = vadd.f32 %v288, %v289
    %v291 = vadd.f32 %v75, %v91
    %v292 = vrot.slane %v291, 4
    %v293 = vadd.f32 %v291, %v292
    %v294 = vrot.slane %v293, 2
    %v295 = vadd.f32 %v293, %v294
    %v296 = vrot.slane %v295, 1
    %v297 = vadd.f32 %v295, %v296
    %v298 = vadd.f32 %v76, %v92
    %v299 = vrot.slane %v298, 4
    %v300 = vadd.f32 %v298, %v299
    %v301 = vrot.slane %v300, 2
    %v302 = vadd.f32 %v300, %v301
    %v303 = vrot.slane %v302, 1
    %v304 = vadd.f32 %v302, %v303
    %v305 = vadd.f32 %v77, %v93
    %v306 = vrot.slane %v305, 4
    %v307 = vadd.f32 %v305, %v306
    %v308 = vrot.slane %v307, 2
    %v309 = vadd.f32 %v307, %v308
    %v310 = vrot.slane %v309, 1
    %v311 = vadd.f32 %v309, %v310
    %v312 = vadd.f32 %v78, %v94
    %v313 = vrot.slane %v312, 4
    %v314 = vadd.f32 %v312, %v313
    %v315 = vrot.slane %v314, 2
    %v316 = vadd.f32 %v314, %v315
    %v317 = vrot.slane %v316, 1
    %v318 = vadd.f32 %v316, %v317
    %v319 = vrcp.pop 16.0
    %v320 = vmul.f32 16.0, %v319
    %v321 = vsub.f32 1.0, %v320
    %v322 = vmul.f32 %v319, %v321
    %v323 = vadd.f32 %v319, %v322
    %vm324 = vweird.f32 %v319
    %v325 = vsel %vm324, %v319, %v323
    %v326 = vmul.f32 %v101, %v325
    %v327 = vmul.f32 %v108, %v325
    %v328 = vmul.f32 %v115, %v325
    %v329 = vmul.f32 %v122, %v325
    %v330 = vmul.f32 %v129, %v325
    %v331 = vmul.f32 %v136, %v325
    %v332 = vmul.f32 %v143, %v325
    %v333 = vmul.f32 %v150, %v325
    %v334 = vmul.f32 %v157, %v325
    %v335 = vmul.f32 %v164, %v325
    %v336 = vmul.f32 %v171, %v325
    %v337 = vmul.f32 %v178, %v325
    %v338 = vmul.f32 %v185, %v325
    %v339 = vmul.f32 %v192, %v325
    %v340 = vmul.f32 %v199, %v325
    %v341 = vmul.f32 %v206, %v325
    %v342 = vmul.f32 %v213, %v325
    %v343 = vmul.f32 %v220, %v325
    %v344 = vmul.f32 %v227, %v325
    %v345 = vmul.f32 %v234, %v325
    %v346 = vmul.f32 %v241, %v325
    %v347 = vmul.f32 %v248, %v325
    %v348 = vmul.f32 %v255, %v325
    %v349 = vmul.f32 %v262, %v325
    %v350 = vmul.f32 %v269, %v325
    %v351 = vmul.f32 %v276, %v325
    %v352 = vmul.f32 %v283, %v325
    %v353 = vmul.f32 %v290, %v325
    %v354 = vmul.f32 %v297, %v325
    %v355 = vmul.f32 %v304, %v325
    %v356 = vmul.f32 %v311, %v325
    %v357 = vmul.f32 %v318, %v325
    %v358 = vld [vmem:[#allocation2] sm:$0xff]
    %v359 = vld [vmem:[#allocation2 + $0x8] sm:$0xff]
    %v360 = vld [vmem:[#allocation2 + $0x10] sm:$0xff]
    %v361 = vld [vmem:[#allocation2 + $0x18] sm:$0xff]
    %v362 = vld [vmem:[#allocation2 + $0x20] sm:$0xff]
    %v363 = vld [vmem:[#allocation2 + $0x28] sm:$0xff]
    %v364 = vld [vmem:[#allocation2 + $0x30] sm:$0xff]
    %v365 = vld [vmem:[#allocation2 + $0x38] sm:$0xff]
    %v366 = vld [vmem:[#allocation2 + $0x40] sm:$0xff]
    %v367 = vld [vmem:[#allocation2 + $0x48] sm:$0xff]
    %v368 = vld [vmem:[#allocation2 + $0x50] sm:$0xff]
    %v369 = vld [vmem:[#allocation2 + $0x58] sm:$0xff]
    %v370 = vld [vmem:[#allocation2 + $0x60] sm:$0xff]
    %v371 = vld [vmem:[#allocation2 + $0x68] sm:$0xff]
    %v372 = vld [vmem:[#allocation2 + $0x70] sm:$0xff]
    %v373 = vld [vmem:[#allocation2 + $0x78] sm:$0xff]
    %v374 = vld [vmem:[#allocation2 + $0x80] sm:$0xff]
    %v375 = vld [vmem:[#allocation2 + $0x88] sm:$0xff]
    %v376 = vld [vmem:[#allocation2 + $0x90] sm:$0xff]
    %v377 = vld [vmem:[#allocation2 + $0x98] sm:$0xff]
    %v378 = vld [vmem:[#allocation2 + $0xa0] sm:$0xff]
    %v379 = vld [vmem:[#allocation2 + $0xa8] sm:$0xff]
    %v380 = vld [vmem:[#allocation2 + $0xb0] sm:$0xff]
    %v381 = vld [vmem:[#allocation2 + $0xb8] sm:$0xff]
    %v382 = vld [vmem:[#allocation2 + $0xc0] sm:$0xff]
    %v383 = vld [vmem:[#allocation2 + $0xc8] sm:$0xff]
    %v384 = vld [vmem:[#allocation2 + $0xd0] sm:$0xff]
    %v385 = vld [vmem:[#allocation2 + $0xd8] sm:$0xff]
    %v386 = vld [vmem:[#allocation2 + $0xe0] sm:$0xff]
    %v387 = vld [vmem:[#allocation2 + $0xe8] sm:$0xff]
    %v388 = vld [vmem:[#allocation2 + $0xf0] sm:$0xff]
    %v389 = vld [vmem:[#allocation2 + $0xf8] sm:$0xff]
    %v390 = vld [vmem:[#allocation2 + $0x100] sm:$0xff]
    %v391 = vld [vmem:[#allocation2 + $0x108] sm:$0xff]
    %v392 = vld [vmem:[#allocation2 + $0x110] sm:$0xff]
    %v393 = vld [vmem:[#allocation2 + $0x118] sm:$0xff]
    %v394 = vld [vmem:[#allocation2 + $0x120] sm:$0xff]
    %v395 = vld [vmem:[#allocation2 + $0x128] sm:$0xff]
    %v396 = vld [vmem:[#allocation2 + $0x130] sm:$0xff]
    %v397 = vld [vmem:[#allocation2 + $0x138] sm:$0xff]
    %v398 = vld [vmem:[#allocation2 + $0x140] sm:$0xff]
    %v399 = vld [vmem:[#allocation2 + $0x148] sm:$0xff]
    %v400 = vld [vmem:[#allocation2 + $0x150] sm:$0xff]
    %v401 = vld [vmem:[#allocation2 + $0x158] sm:$0xff]
    %v402 = vld [vmem:[#allocation2 + $0x160] sm:$0xff]
    %v403 = vld [vmem:[#allocation2 + $0x168] sm:$0xff]
    %v404 = vld [vmem:[#allocation2 + $0x170] sm:$0xff]
    %v405 = vld [vmem:[#allocation2 + $0x178] sm:$0xff]
    %v406 = vld [vmem:[#allocation2 + $0x180] sm:$0xff]
    %v407 = vld [vmem:[#allocation2 + $0x188] sm:$0xff]
    %v408 = vld [vmem:[#allocation2 + $0x190] sm:$0xff]
    %v409 = vld [vmem:[#allocation2 + $0x198] sm:$0xff]
    %v410 = vld [vmem:[#allocation2 + $0x1a0] sm:$0xff]
    %v411 = vld [vmem:[#allocation2 + $0x1a8] sm:$0xff]
    %v412 = vld [vmem:[#allocation2 + $0x1b0] sm:$0xff]
    %v413 = vld [vmem:[#allocation2 + $0x1b8] sm:$0xff]
    %v414 = vld [vmem:[#allocation2 + $0x1c0] sm:$0xff]
    %v415 = vld [vmem:[#allocation2 + $0x1c8] sm:$0xff]
    %v416 = vld [vmem:[#allocation2 + $0x1d0] sm:$0xff]
    %v417 = vld [vmem:[#allocation2 + $0x1d8] sm:$0xff]
    %v418 = vld [vmem:[#allocation2 + $0x1e0] sm:$0xff]
    %v419 = vld [vmem:[#allocation2 + $0x1e8] sm:$0xff]
    %v420 = vld [vmem:[#allocation2 + $0x1f0] sm:$0xff]
    %v421 = vld [vmem:[#allocation2 + $0x1f8] sm:$0xff]
    %v422 = vld [vmem:[#allocation2 + $0x200] sm:$0xff]
    %v423 = vld [vmem:[#allocation2 + $0x208] sm:$0xff]
    %v424 = vld [vmem:[#allocation2 + $0x210] sm:$0xff]
    %v425 = vld [vmem:[#allocation2 + $0x218] sm:$0xff]
    %v426 = vld [vmem:[#allocation2 + $0x220] sm:$0xff]
    %v427 = vld [vmem:[#allocation2 + $0x228] sm:$0xff]
    %v428 = vld [vmem:[#allocation2 + $0x230] sm:$0xff]
    %v429 = vld [vmem:[#allocation2 + $0x238] sm:$0xff]
    %v430 = vld [vmem:[#allocation2 + $0x240] sm:$0xff]
    %v431 = vld [vmem:[#allocation2 + $0x248] sm:$0xff]
    %v432 = vld [vmem:[#allocation2 + $0x250] sm:$0xff]
    %v433 = vld [vmem:[#allocation2 + $0x258] sm:$0xff]
    %v434 = vld [vmem:[#allocation2 + $0x260] sm:$0xff]
    %v435 = vld [vmem:[#allocation2 + $0x268] sm:$0xff]
    %v436 = vld [vmem:[#allocation2 + $0x270] sm:$0xff]
    %v437 = vld [vmem:[#allocation2 + $0x278] sm:$0xff]
    %v438 = vld [vmem:[#allocation2 + $0x280] sm:$0xff]
    %v439 = vld [vmem:[#allocation2 + $0x288] sm:$0xff]
    %v440 = vld [vmem:[#allocation2 + $0x290] sm:$0xff]
    %v441 = vld [vmem:[#allocation2 + $0x298] sm:$0xff]
    %v442 = vld [vmem:[#allocation2 + $0x2a0] sm:$0xff]
    %v443 = vld [vmem:[#allocation2 + $0x2a8] sm:$0xff]
    %v444 = vld [vmem:[#allocation2 + $0x2b0] sm:$0xff]
    %v445 = vld [vmem:[#allocation2 + $0x2b8] sm:$0xff]
    %v446 = vld [vmem:[#allocation2 + $0x2c0] sm:$0xff]
    %v447 = vld [vmem:[#allocation2 + $0x2c8] sm:$0xff]
    %v448 = vld [vmem:[#allocation2 + $0x2d0] sm:$0xff]
    %v449 = vld [vmem:[#allocation2 + $0x2d8] sm:$0xff]
    %v450 = vld [vmem:[#allocation2 + $0x2e0] sm:$0xff]
    %v451 = vld [vmem:[#allocation2 + $0x2e8] sm:$0xff]
    %v452 = vld [vmem:[#allocation2 + $0x2f0] sm:$0xff]
    %v453 = vld [vmem:[#allocation2 + $0x2f8] sm:$0xff]
    %v454 = vld [vmem:[#allocation2 + $0x300] sm:$0xff]
    %v455 = vld [vmem:[#allocation2 + $0x308] sm:$0xff]
    %v456 = vld [vmem:[#allocation2 + $0x310] sm:$0xff]
    %v457 = vld [vmem:[#allocation2 + $0x318] sm:$0xff]
    %v458 = vld [vmem:[#allocation2 + $0x320] sm:$0xff]
    %v459 = vld [vmem:[#allocation2 + $0x328] sm:$0xff]
    %v460 = vld [vmem:[#allocation2 + $0x330] sm:$0xff]
    %v461 = vld [vmem:[#allocation2 + $0x338] sm:$0xff]
    %v462 = vld [vmem:[#allocation2 + $0x340] sm:$0xff]
    %v463 = vld [vmem:[#allocation2 + $0x348] sm:$0xff]
    %v464 = vld [vmem:[#allocation2 + $0x350] sm:$0xff]
    %v465 = vld [vmem:[#allocation2 + $0x358] sm:$0xff]
    %v466 = vld [vmem:[#allocation2 + $0x360] sm:$0xff]
    %v467 = vld [vmem:[#allocation2 + $0x368] sm:$0xff]
    %v468 = vld [vmem:[#allocation2 + $0x370] sm:$0xff]
    %v469 = vld [vmem:[#allocation2 + $0x378] sm:$0xff]
    %v470 = vld [vmem:[#allocation2 + $0x380] sm:$0xff]
    %v471 = vld [vmem:[#allocation2 + $0x388] sm:$0xff]
    %v472 = vld [vmem:[#allocation2 + $0x390] sm:$0xff]
    %v473 = vld [vmem:[#allocation2 + $0x398] sm:$0xff]
    %v474 = vld [vmem:[#allocation2 + $0x3a0] sm:$0xff]
    %v475 = vld [vmem:[#allocation2 + $0x3a8] sm:$0xff]
    %v476 = vld [vmem:[#allocation2 + $0x3b0] sm:$0xff]
    %v477 = vld [vmem:[#allocation2 + $0x3b8] sm:$0xff]
    %v478 = vld [vmem:[#allocation2 + $0x3c0] sm:$0xff]
    %v479 = vld [vmem:[#allocation2 + $0x3c8] sm:$0xff]
    %v480 = vld [vmem:[#allocation2 + $0x3d0] sm:$0xff]
    %v481 = vld [vmem:[#allocation2 + $0x3d8] sm:$0xff]
    %v482 = vld [vmem:[#allocation2 + $0x3e0] sm:$0xff]
    %v483 = vld [vmem:[#allocation2 + $0x3e8] sm:$0xff]
    %v484 = vld [vmem:[#allocation2 + $0x3f0] sm:$0xff]
    %v485 = vld [vmem:[#allocation2 + $0x3f8] sm:$0xff]
    %v486 = vld [vmem:[#allocation2 + $0x400] sm:$0xff]
    %v487 = vld [vmem:[#allocation2 + $0x408] sm:$0xff]
    %v488 = vld [vmem:[#allocation2 + $0x410] sm:$0xff]
    %v489 = vld [vmem:[#allocation2 + $0x418] sm:$0xff]
    %v490 = vld [vmem:[#allocation2 + $0x420] sm:$0xff]
    %v491 = vld [vmem:[#allocation2 + $0x428] sm:$0xff]
    %v492 = vld [vmem:[#allocation2 + $0x430] sm:$0xff]
    %v493 = vld [vmem:[#allocation2 + $0x438] sm:$0xff]
    %v494 = vld [vmem:[#allocation2 + $0x440] sm:$0xff]
    %v495 = vld [vmem:[#allocation2 + $0x448] sm:$0xff]
    %v496 = vld [vmem:[#allocation2 + $0x450] sm:$0xff]
    %v497 = vld [vmem:[#allocation2 + $0x458] sm:$0xff]
    %v498 = vld [vmem:[#allocation2 + $0x460] sm:$0xff]
    %v499 = vld [vmem:[#allocation2 + $0x468] sm:$0xff]
    %v500 = vld [vmem:[#allocation2 + $0x470] sm:$0xff]
    %v501 = vld [vmem:[#allocation2 + $0x478] sm:$0xff]
    %v502 = vld [vmem:[#allocation2 + $0x480] sm:$0xff]
    %v503 = vld [vmem:[#allocation2 + $0x488] sm:$0xff]
    %v504 = vld [vmem:[#allocation2 + $0x490] sm:$0xff]
    %v505 = vld [vmem:[#allocation2 + $0x498] sm:$0xff]
    %v506 = vld [vmem:[#allocation2 + $0x4a0] sm:$0xff]
    %v507 = vld [vmem:[#allocation2 + $0x4a8] sm:$0xff]
    %v508 = vld [vmem:[#allocation2 + $0x4b0] sm:$0xff]
    %v509 = vld [vmem:[#allocation2 + $0x4b8] sm:$0xff]
    %v510 = vld [vmem:[#allocation2 + $0x4c0] sm:$0xff]
    %v511 = vld [vmem:[#allocation2 + $0x4c8] sm:$0xff]
    %v512 = vld [vmem:[#allocation2 + $0x4d0] sm:$0xff]
    %v513 = vld [vmem:[#allocation2 + $0x4d8] sm:$0xff]
    %v514 = vld [vmem:[#allocation2 + $0x4e0] sm:$0xff]
    %v515 = vld [vmem:[#allocation2 + $0x4e8] sm:$0xff]
    %v516 = vld [vmem:[#allocation2 + $0x4f0] sm:$0xff]
    %v517 = vld [vmem:[#allocation2 + $0x4f8] sm:$0xff]
    %v518 = vld [vmem:[#allocation2 + $0x500] sm:$0xff]
    %v519 = vld [vmem:[#allocation2 + $0x508] sm:$0xff]
    %v520 = vld [vmem:[#allocation2 + $0x510] sm:$0xff]
    %v521 = vld [vmem:[#allocation2 + $0x518] sm:$0xff]
    %v522 = vld [vmem:[#allocation2 + $0x520] sm:$0xff]
    %v523 = vld [vmem:[#allocation2 + $0x528] sm:$0xff]
    %v524 = vld [vmem:[#allocation2 + $0x530] sm:$0xff]
    %v525 = vld [vmem:[#allocation2 + $0x538] sm:$0xff]
    %v526 = vld [vmem:[#allocation2 + $0x540] sm:$0xff]
    %v527 = vld [vmem:[#allocation2 + $0x548] sm:$0xff]
    %v528 = vld [vmem:[#allocation2 + $0x550] sm:$0xff]
    %v529 = vld [vmem:[#allocation2 + $0x558] sm:$0xff]
    %v530 = vld [vmem:[#allocation2 + $0x560] sm:$0xff]
    %v531 = vld [vmem:[#allocation2 + $0x568] sm:$0xff]
    %v532 = vld [vmem:[#allocation2 + $0x570] sm:$0xff]
    %v533 = vld [vmem:[#allocation2 + $0x578] sm:$0xff]
    %v534 = vld [vmem:[#allocation2 + $0x580] sm:$0xff]
    %v535 = vld [vmem:[#allocation2 + $0x588] sm:$0xff]
    %v536 = vld [vmem:[#allocation2 + $0x590] sm:$0xff]
    %v537 = vld [vmem:[#allocation2 + $0x598] sm:$0xff]
    %v538 = vld [vmem:[#allocation2 + $0x5a0] sm:$0xff]
    %v539 = vld [vmem:[#allocation2 + $0x5a8] sm:$0xff]
    %v540 = vld [vmem:[#allocation2 + $0x5b0] sm:$0xff]
    %v541 = vld [vmem:[#allocation2 + $0x5b8] sm:$0xff]
    %v542 = vld [vmem:[#allocation2 + $0x5c0] sm:$0xff]
    %v543 = vld [vmem:[#allocation2 + $0x5c8] sm:$0xff]
    %v544 = vld [vmem:[#allocation2 + $0x5d0] sm:$0xff]
    %v545 = vld [vmem:[#allocation2 + $0x5d8] sm:$0xff]
    %v546 = vld [vmem:[#allocation2 + $0x5e0] sm:$0xff]
    %v547 = vld [vmem:[#allocation2 + $0x5e8] sm:$0xff]
    %v548 = vld [vmem:[#allocation2 + $0x5f0] sm:$0xff]
    %v549 = vld [vmem:[#allocation2 + $0x5f8] sm:$0xff]
    %v550 = vld [vmem:[#allocation2 + $0x600] sm:$0xff]
    %v551 = vld [vmem:[#allocation2 + $0x608] sm:$0xff]
    %v552 = vld [vmem:[#allocation2 + $0x610] sm:$0xff]
    %v553 = vld [vmem:[#allocation2 + $0x618] sm:$0xff]
    %v554 = vld [vmem:[#allocation2 + $0x620] sm:$0xff]
    %v555 = vld [vmem:[#allocation2 + $0x628] sm:$0xff]
    %v556 = vld [vmem:[#allocation2 + $0x630] sm:$0xff]
    %v557 = vld [vmem:[#allocation2 + $0x638] sm:$0xff]
    %v558 = vld [vmem:[#allocation2 + $0x640] sm:$0xff]
    %v559 = vld [vmem:[#allocation2 + $0x648] sm:$0xff]
    %v560 = vld [vmem:[#allocation2 + $0x650] sm:$0xff]
    %v561 = vld [vmem:[#allocation2 + $0x658] sm:$0xff]
    %v562 = vld [vmem:[#allocation2 + $0x660] sm:$0xff]
    %v563 = vld [vmem:[#allocation2 + $0x668] sm:$0xff]
    %v564 = vld [vmem:[#allocation2 + $0x670] sm:$0xff]
    %v565 = vld [vmem:[#allocation2 + $0x678] sm:$0xff]
    %v566 = vld [vmem:[#allocation2 + $0x680] sm:$0xff]
    %v567 = vld [vmem:[#allocation2 + $0x688] sm:$0xff]
    %v568 = vld [vmem:[#allocation2 + $0x690] sm:$0xff]
    %v569 = vld [vmem:[#allocation2 + $0x698] sm:$0xff]
    %v570 = vld [vmem:[#allocation2 + $0x6a0] sm:$0xff]
    %v571 = vld [vmem:[#allocation2 + $0x6a8] sm:$0xff]
    %v572 = vld [vmem:[#allocation2 + $0x6b0] sm:$0xff]
    %v573 = vld [vmem:[#allocation2 + $0x6b8] sm:$0xff]
    %v574 = vld [vmem:[#allocation2 + $0x6c0] sm:$0xff]
    %v575 = vld [vmem:[#allocation2 + $0x6c8] sm:$0xff]
    %v576 = vld [vmem:[#allocation2 + $0x6d0] sm:$0xff]
    %v577 = vld [vmem:[#allocation2 + $0x6d8] sm:$0xff]
    %v578 = vld [vmem:[#allocation2 + $0x6e0] sm:$0xff]
    %v579 = vld [vmem:[#allocation2 + $0x6e8] sm:$0xff]
    %v580 = vld [vmem:[#allocation2 + $0x6f0] sm:$0xff]
    %v581 = vld [vmem:[#allocation2 + $0x6f8] sm:$0xff]
    %v582 = vld [vmem:[#allocation2 + $0x700] sm:$0xff]
    %v583 = vld [vmem:[#allocation2 + $0x708] sm:$0xff]
    %v584 = vld [vmem:[#allocation2 + $0x710] sm:$0xff]
    %v585 = vld [vmem:[#allocation2 + $0x718] sm:$0xff]
    %v586 = vld [vmem:[#allocation2 + $0x720] sm:$0xff]
    %v587 = vld [vmem:[#allocation2 + $0x728] sm:$0xff]
    %v588 = vld [vmem:[#allocation2 + $0x730] sm:$0xff]
    %v589 = vld [vmem:[#allocation2 + $0x738] sm:$0xff]
    %v590 = vld [vmem:[#allocation2 + $0x740] sm:$0xff]
    %v591 = vld [vmem:[#allocation2 + $0x748] sm:$0xff]
    %v592 = vld [vmem:[#allocation2 + $0x750] sm:$0xff]
    %v593 = vld [vmem:[#allocation2 + $0x758] sm:$0xff]
    %v594 = vld [vmem:[#allocation2 + $0x760] sm:$0xff]
    %v595 = vld [vmem:[#allocation2 + $0x768] sm:$0xff]
    %v596 = vld [vmem:[#allocation2 + $0x770] sm:$0xff]
    %v597 = vld [vmem:[#allocation2 + $0x778] sm:$0xff]
    %v598 = vld [vmem:[#allocation2 + $0x780] sm:$0xff]
    %v599 = vld [vmem:[#allocation2 + $0x788] sm:$0xff]
    %v600 = vld [vmem:[#allocation2 + $0x790] sm:$0xff]
    %v601 = vld [vmem:[#allocation2 + $0x798] sm:$0xff]
    %v602 = vld [vmem:[#allocation2 + $0x7a0] sm:$0xff]
    %v603 = vld [vmem:[#allocation2 + $0x7a8] sm:$0xff]
    %v604 = vld [vmem:[#allocation2 + $0x7b0] sm:$0xff]
    %v605 = vld [vmem:[#allocation2 + $0x7b8] sm:$0xff]
    %v606 = vld [vmem:[#allocation2 + $0x7c0] sm:$0xff]
    %v607 = vld [vmem:[#allocation2 + $0x7c8] sm:$0xff]
    %v608 = vld [vmem:[#allocation2 + $0x7d0] sm:$0xff]
    %v609 = vld [vmem:[#allocation2 + $0x7d8] sm:$0xff]
    %v610 = vld [vmem:[#allocation2 + $0x7e0] sm:$0xff]
    %v611 = vld [vmem:[#allocation2 + $0x7e8] sm:$0xff]
    %v612 = vld [vmem:[#allocation2 + $0x7f0] sm:$0xff]
    %v613 = vld [vmem:[#allocation2 + $0x7f8] sm:$0xff]
    %v614 = vld [vmem:[%s2] sm:$0x1]
    %v616 = vperm.slane %v614, 0
    %vm650 = vcmask 1041409
    %v651 = vsel %vm650, %v342, %v326
    %v652 = vsel %vm650, %v343, %v327
    %v653 = vsel %vm650, %v344, %v328
    %v654 = vsel %vm650, %v345, %v329
    %v655 = vsel %vm650, %v346, %v330
    %v656 = vsel %vm650, %v347, %v331
    %v657 = vsel %vm650, %v348, %v332
    %v658 = vsel %vm650, %v349, %v333
    %v659 = vsel %vm650, %v350, %v334
    %v660 = vsel %vm650, %v351, %v335
    %v661 = vsel %vm650, %v352, %v336
    %v662 = vsel %vm650, %v353, %v337
    %v663 = vsel %vm650, %v354, %v338
    %v664 = vsel %vm650, %v355, %v339
    %v665 = vsel %vm650, %v356, %v340
    %v666 = vsel %vm650, %v357, %v341
    %683 = vmatpush.xpose.msra.mxu0 %v598
    %684 = vmatpush.xpose.msra.mxu0 %v582
    %685 = vmatpush.xpose.msra.mxu0 %v566
    %686 = vmatpush.xpose.msra.mxu0 %v550
    %687 = vmatpush.xpose.msra.mxu0 %v534
    %688 = vmatpush.xpose.msra.mxu0 %v518
    %689 = vmatpush.xpose.msra.mxu0 %v502
    %690 = vmatpush.xpose.msra.mxu0 %v486
    %691 = vmatpush.xpose.msra.mxu0 %v470
    %692 = vmatpush.xpose.msra.mxu0 %v454
    %693 = vmatpush.xpose.msra.mxu0 %v438
    %694 = vmatpush.xpose.msra.mxu0 %v422
    %695 = vmatpush.xpose.msra.mxu0 %v406
    %696 = vmatpush.xpose.msra.mxu0 %v390
    %697 = vmatpush.xpose.msra.mxu0 %v374
    %698 = vmatpush.xpose.msra.mxu0 %v358
    %699 = vmatmul.f32.gmra.mxu0 %v651
    %v700 = vpop.f32.mrf.mxu0
    %v701 = vadd.f32 %v616, %v700
    %702 = vdwg.mxu0
    %703 = vmatpush.xpose.msra.mxu0 %v599
    %704 = vmatpush.xpose.msra.mxu0 %v583
    %705 = vmatpush.xpose.msra.mxu0 %v567
    %706 = vmatpush.xpose.msra.mxu0 %v551
    %707 = vmatpush.xpose.msra.mxu0 %v535
    %708 = vmatpush.xpose.msra.mxu0 %v519
    %709 = vmatpush.xpose.msra.mxu0 %v503
    %710 = vmatpush.xpose.msra.mxu0 %v487
    %711 = vmatpush.xpose.msra.mxu0 %v471
    %712 = vmatpush.xpose.msra.mxu0 %v455
    %713 = vmatpush.xpose.msra.mxu0 %v439
    %714 = vmatpush.xpose.msra.mxu0 %v423
    %715 = vmatpush.xpose.msra.mxu0 %v407
    %716 = vmatpush.xpose.msra.mxu0 %v391
    %717 = vmatpush.xpose.msra.mxu0 %v375
    %718 = vmatpush.xpose.msra.mxu0 %v359
    %719 = vmatmul.f32.gmra.mxu0 %v652
    %v720 = vpop.f32.mrf.mxu0
    %v721 = vadd.f32 %v701, %v720
    %722 = vdwg.mxu0
    %723 = vmatpush.xpose.msra.mxu0 %v600
    %724 = vmatpush.xpose.msra.mxu0 %v584
    %725 = vmatpush.xpose.msra.mxu0 %v568
    %726 = vmatpush.xpose.msra.mxu0 %v552
    %727 = vmatpush.xpose.msra.mxu0 %v536
    %728 = vmatpush.xpose.msra.mxu0 %v520
    %729 = vmatpush.xpose.msra.mxu0 %v504
    %730 = vmatpush.xpose.msra.mxu0 %v488
    %731 = vmatpush.xpose.msra.mxu0 %v472
    %732 = vmatpush.xpose.msra.mxu0 %v456
    %733 = vmatpush.xpose.msra.mxu0 %v440
    %734 = vmatpush.xpose.msra.mxu0 %v424
    %735 = vmatpush.xpose.msra.mxu0 %v408
    %736 = vmatpush.xpose.msra.mxu0 %v392
    %737 = vmatpush.xpose.msra.mxu0 %v376
    %738 = vmatpush.xpose.msra.mxu0 %v360
    %739 = vmatmul.f32.gmra.mxu0 %v653
    %v740 = vpop.f32.mrf.mxu0
    %v741 = vadd.f32 %v721, %v740
    %742 = vdwg.mxu0
    %743 = vmatpush.xpose.msra.mxu0 %v601
    %744 = vmatpush.xpose.msra.mxu0 %v585
    %745 = vmatpush.xpose.msra.mxu0 %v569
    %746 = vmatpush.xpose.msra.mxu0 %v553
    %747 = vmatpush.xpose.msra.mxu0 %v537
    %748 = vmatpush.xpose.msra.mxu0 %v521
    %749 = vmatpush.xpose.msra.mxu0 %v505
    %750 = vmatpush.xpose.msra.mxu0 %v489
    %751 = vmatpush.xpose.msra.mxu0 %v473
    %752 = vmatpush.xpose.msra.mxu0 %v457
    %753 = vmatpush.xpose.msra.mxu0 %v441
    %754 = vmatpush.xpose.msra.mxu0 %v425
    %755 = vmatpush.xpose.msra.mxu0 %v409
    %756 = vmatpush.xpose.msra.mxu0 %v393
    %757 = vmatpush.xpose.msra.mxu0 %v377
    %758 = vmatpush.xpose.msra.mxu0 %v361
    %759 = vmatmul.f32.gmra.mxu0 %v654
    %v760 = vpop.f32.mrf.mxu0
    %v761 = vadd.f32 %v741, %v760
    %762 = vdwg.mxu0
    %763 = vmatpush.xpose.msra.mxu0 %v602
    %764 = vmatpush.xpose.msra.mxu0 %v586
    %765 = vmatpush.xpose.msra.mxu0 %v570
    %766 = vmatpush.xpose.msra.mxu0 %v554
    %767 = vmatpush.xpose.msra.mxu0 %v538
    %768 = vmatpush.xpose.msra.mxu0 %v522
    %769 = vmatpush.xpose.msra.mxu0 %v506
    %770 = vmatpush.xpose.msra.mxu0 %v490
    %771 = vmatpush.xpose.msra.mxu0 %v474
    %772 = vmatpush.xpose.msra.mxu0 %v458
    %773 = vmatpush.xpose.msra.mxu0 %v442
    %774 = vmatpush.xpose.msra.mxu0 %v426
    %775 = vmatpush.xpose.msra.mxu0 %v410
    %776 = vmatpush.xpose.msra.mxu0 %v394
    %777 = vmatpush.xpose.msra.mxu0 %v378
    %778 = vmatpush.xpose.msra.mxu0 %v362
    %779 = vmatmul.f32.gmra.mxu0 %v655
    %v780 = vpop.f32.mrf.mxu0
    %v781 = vadd.f32 %v761, %v780
    %782 = vdwg.mxu0
    %783 = vmatpush.xpose.msra.mxu0 %v603
    %784 = vmatpush.xpose.msra.mxu0 %v587
    %785 = vmatpush.xpose.msra.mxu0 %v571
    %786 = vmatpush.xpose.msra.mxu0 %v555
    %787 = vmatpush.xpose.msra.mxu0 %v539
    %788 = vmatpush.xpose.msra.mxu0 %v523
    %789 = vmatpush.xpose.msra.mxu0 %v507
    %790 = vmatpush.xpose.msra.mxu0 %v491
    %791 = vmatpush.xpose.msra.mxu0 %v475
    %792 = vmatpush.xpose.msra.mxu0 %v459
    %793 = vmatpush.xpose.msra.mxu0 %v443
    %794 = vmatpush.xpose.msra.mxu0 %v427
    %795 = vmatpush.xpose.msra.mxu0 %v411
    %796 = vmatpush.xpose.msra.mxu0 %v395
    %797 = vmatpush.xpose.msra.mxu0 %v379
    %798 = vmatpush.xpose.msra.mxu0 %v363
    %799 = vmatmul.f32.gmra.mxu0 %v656
    %v800 = vpop.f32.mrf.mxu0
    %v801 = vadd.f32 %v781, %v800
    %802 = vdwg.mxu0
    %803 = vmatpush.xpose.msra.mxu0 %v604
    %804 = vmatpush.xpose.msra.mxu0 %v588
    %805 = vmatpush.xpose.msra.mxu0 %v572
    %806 = vmatpush.xpose.msra.mxu0 %v556
    %807 = vmatpush.xpose.msra.mxu0 %v540
    %808 = vmatpush.xpose.msra.mxu0 %v524
    %809 = vmatpush.xpose.msra.mxu0 %v508
    %810 = vmatpush.xpose.msra.mxu0 %v492
    %811 = vmatpush.xpose.msra.mxu0 %v476
    %812 = vmatpush.xpose.msra.mxu0 %v460
    %813 = vmatpush.xpose.msra.mxu0 %v444
    %814 = vmatpush.xpose.msra.mxu0 %v428
    %815 = vmatpush.xpose.msra.mxu0 %v412
    %816 = vmatpush.xpose.msra.mxu0 %v396
    %817 = vmatpush.xpose.msra.mxu0 %v380
    %818 = vmatpush.xpose.msra.mxu0 %v364
    %819 = vmatmul.f32.gmra.mxu0 %v657
    %v820 = vpop.f32.mrf.mxu0
    %v821 = vadd.f32 %v801, %v820
    %822 = vdwg.mxu0
    %823 = vmatpush.xpose.msra.mxu0 %v605
    %824 = vmatpush.xpose.msra.mxu0 %v589
    %825 = vmatpush.xpose.msra.mxu0 %v573
    %826 = vmatpush.xpose.msra.mxu0 %v557
    %827 = vmatpush.xpose.msra.mxu0 %v541
    %828 = vmatpush.xpose.msra.mxu0 %v525
    %829 = vmatpush.xpose.msra.mxu0 %v509
    %830 = vmatpush.xpose.msra.mxu0 %v493
    %831 = vmatpush.xpose.msra.mxu0 %v477
    %832 = vmatpush.xpose.msra.mxu0 %v461
    %833 = vmatpush.xpose.msra.mxu0 %v445
    %834 = vmatpush.xpose.msra.mxu0 %v429
    %835 = vmatpush.xpose.msra.mxu0 %v413
    %836 = vmatpush.xpose.msra.mxu0 %v397
    %837 = vmatpush.xpose.msra.mxu0 %v381
    %838 = vmatpush.xpose.msra.mxu0 %v365
    %839 = vmatmul.f32.gmra.mxu0 %v658
    %v840 = vpop.f32.mrf.mxu0
    %v841 = vadd.f32 %v821, %v840
    %842 = vdwg.mxu0
    %843 = vmatpush.xpose.msra.mxu0 %v606
    %844 = vmatpush.xpose.msra.mxu0 %v590
    %845 = vmatpush.xpose.msra.mxu0 %v574
    %846 = vmatpush.xpose.msra.mxu0 %v558
    %847 = vmatpush.xpose.msra.mxu0 %v542
    %848 = vmatpush.xpose.msra.mxu0 %v526
    %849 = vmatpush.xpose.msra.mxu0 %v510
    %850 = vmatpush.xpose.msra.mxu0 %v494
    %851 = vmatpush.xpose.msra.mxu0 %v478
    %852 = vmatpush.xpose.msra.mxu0 %v462
    %853 = vmatpush.xpose.msra.mxu0 %v446
    %854 = vmatpush.xpose.msra.mxu0 %v430
    %855 = vmatpush.xpose.msra.mxu0 %v414
    %856 = vmatpush.xpose.msra.mxu0 %v398
    %857 = vmatpush.xpose.msra.mxu0 %v382
    %858 = vmatpush.xpose.msra.mxu0 %v366
    %859 = vmatmul.f32.gmra.mxu0 %v659
    %v860 = vpop.f32.mrf.mxu0
    %v861 = vadd.f32 %v841, %v860
    %862 = vdwg.mxu0
    %863 = vmatpush.xpose.msra.mxu0 %v607
    %864 = vmatpush.xpose.msra.mxu0 %v591
    %865 = vmatpush.xpose.msra.mxu0 %v575
    %866 = vmatpush.xpose.msra.mxu0 %v559
    %867 = vmatpush.xpose.msra.mxu0 %v543
    %868 = vmatpush.xpose.msra.mxu0 %v527
    %869 = vmatpush.xpose.msra.mxu0 %v511
    %870 = vmatpush.xpose.msra.mxu0 %v495
    %871 = vmatpush.xpose.msra.mxu0 %v479
    %872 = vmatpush.xpose.msra.mxu0 %v463
    %873 = vmatpush.xpose.msra.mxu0 %v447
    %874 = vmatpush.xpose.msra.mxu0 %v431
    %875 = vmatpush.xpose.msra.mxu0 %v415
    %876 = vmatpush.xpose.msra.mxu0 %v399
    %877 = vmatpush.xpose.msra.mxu0 %v383
    %878 = vmatpush.xpose.msra.mxu0 %v367
    %879 = vmatmul.f32.gmra.mxu0 %v660
    %v880 = vpop.f32.mrf.mxu0
    %v881 = vadd.f32 %v861, %v880
    %882 = vdwg.mxu0
    %883 = vmatpush.xpose.msra.mxu0 %v608
    %884 = vmatpush.xpose.msra.mxu0 %v592
    %885 = vmatpush.xpose.msra.mxu0 %v576
    %886 = vmatpush.xpose.msra.mxu0 %v560
    %887 = vmatpush.xpose.msra.mxu0 %v544
    %888 = vmatpush.xpose.msra.mxu0 %v528
    %889 = vmatpush.xpose.msra.mxu0 %v512
    %890 = vmatpush.xpose.msra.mxu0 %v496
    %891 = vmatpush.xpose.msra.mxu0 %v480
    %892 = vmatpush.xpose.msra.mxu0 %v464
    %893 = vmatpush.xpose.msra.mxu0 %v448
    %894 = vmatpush.xpose.msra.mxu0 %v432
    %895 = vmatpush.xpose.msra.mxu0 %v416
    %896 = vmatpush.xpose.msra.mxu0 %v400
    %897 = vmatpush.xpose.msra.mxu0 %v384
    %898 = vmatpush.xpose.msra.mxu0 %v368
    %899 = vmatmul.f32.gmra.mxu0 %v661
    %v900 = vpop.f32.mrf.mxu0
    %v901 = vadd.f32 %v881, %v900
    %902 = vdwg.mxu0
    %903 = vmatpush.xpose.msra.mxu0 %v609
    %904 = vmatpush.xpose.msra.mxu0 %v593
    %905 = vmatpush.xpose.msra.mxu0 %v577
    %906 = vmatpush.xpose.msra.mxu0 %v561
    %907 = vmatpush.xpose.msra.mxu0 %v545
    %908 = vmatpush.xpose.msra.mxu0 %v529
    %909 = vmatpush.xpose.msra.mxu0 %v513
    %910 = vmatpush.xpose.msra.mxu0 %v497
    %911 = vmatpush.xpose.msra.mxu0 %v481
    %912 = vmatpush.xpose.msra.mxu0 %v465
    %913 = vmatpush.xpose.msra.mxu0 %v449
    %914 = vmatpush.xpose.msra.mxu0 %v433
    %915 = vmatpush.xpose.msra.mxu0 %v417
    %916 = vmatpush.xpose.msra.mxu0 %v401
    %917 = vmatpush.xpose.msra.mxu0 %v385
    %918 = vmatpush.xpose.msra.mxu0 %v369
    %919 = vmatmul.f32.gmra.mxu0 %v662
    %v920 = vpop.f32.mrf.mxu0
    %v921 = vadd.f32 %v901, %v920
    %922 = vdwg.mxu0
    %923 = vmatpush.xpose.msra.mxu0 %v610
    %924 = vmatpush.xpose.msra.mxu0 %v594
    %925 = vmatpush.xpose.msra.mxu0 %v578
    %926 = vmatpush.xpose.msra.mxu0 %v562
    %927 = vmatpush.xpose.msra.mxu0 %v546
    %928 = vmatpush.xpose.msra.mxu0 %v530
    %929 = vmatpush.xpose.msra.mxu0 %v514
    %930 = vmatpush.xpose.msra.mxu0 %v498
    %931 = vmatpush.xpose.msra.mxu0 %v482
    %932 = vmatpush.xpose.msra.mxu0 %v466
    %933 = vmatpush.xpose.msra.mxu0 %v450
    %934 = vmatpush.xpose.msra.mxu0 %v434
    %935 = vmatpush.xpose.msra.mxu0 %v418
    %936 = vmatpush.xpose.msra.mxu0 %v402
    %937 = vmatpush.xpose.msra.mxu0 %v386
    %938 = vmatpush.xpose.msra.mxu0 %v370
    %939 = vmatmul.f32.gmra.mxu0 %v663
    %v940 = vpop.f32.mrf.mxu0
    %v941 = vadd.f32 %v921, %v940
    %942 = vdwg.mxu0
    %943 = vmatpush.xpose.msra.mxu0 %v611
    %944 = vmatpush.xpose.msra.mxu0 %v595
    %945 = vmatpush.xpose.msra.mxu0 %v579
    %946 = vmatpush.xpose.msra.mxu0 %v563
    %947 = vmatpush.xpose.msra.mxu0 %v547
    %948 = vmatpush.xpose.msra.mxu0 %v531
    %949 = vmatpush.xpose.msra.mxu0 %v515
    %950 = vmatpush.xpose.msra.mxu0 %v499
    %951 = vmatpush.xpose.msra.mxu0 %v483
    %952 = vmatpush.xpose.msra.mxu0 %v467
    %953 = vmatpush.xpose.msra.mxu0 %v451
    %954 = vmatpush.xpose.msra.mxu0 %v435
    %955 = vmatpush.xpose.msra.mxu0 %v419
    %956 = vmatpush.xpose.msra.mxu0 %v403
    %957 = vmatpush.xpose.msra.mxu0 %v387
    %958 = vmatpush.xpose.msra.mxu0 %v371
    %959 = vmatmul.f32.gmra.mxu0 %v664
    %v960 = vpop.f32.mrf.mxu0
    %v961 = vadd.f32 %v941, %v960
    %962 = vdwg.mxu0
    %963 = vmatpush.xpose.msra.mxu0 %v612
    %964 = vmatpush.xpose.msra.mxu0 %v596
    %965 = vmatpush.xpose.msra.mxu0 %v580
    %966 = vmatpush.xpose.msra.mxu0 %v564
    %967 = vmatpush.xpose.msra.mxu0 %v548
    %968 = vmatpush.xpose.msra.mxu0 %v532
    %969 = vmatpush.xpose.msra.mxu0 %v516
    %970 = vmatpush.xpose.msra.mxu0 %v500
    %971 = vmatpush.xpose.msra.mxu0 %v484
    %972 = vmatpush.xpose.msra.mxu0 %v468
    %973 = vmatpush.xpose.msra.mxu0 %v452
    %974 = vmatpush.xpose.msra.mxu0 %v436
    %975 = vmatpush.xpose.msra.mxu0 %v420
    %976 = vmatpush.xpose.msra.mxu0 %v404
    %977 = vmatpush.xpose.msra.mxu0 %v388
    %978 = vmatpush.xpose.msra.mxu0 %v372
    %979 = vmatmul.f32.gmra.mxu0 %v665
    %v980 = vpop.f32.mrf.mxu0
    %v981 = vadd.f32 %v961, %v980
    %982 = vdwg.mxu0
    %983 = vmatpush.xpose.msra.mxu0 %v613
    %984 = vmatpush.xpose.msra.mxu0 %v597
    %985 = vmatpush.xpose.msra.mxu0 %v581
    %986 = vmatpush.xpose.msra.mxu0 %v565
    %987 = vmatpush.xpose.msra.mxu0 %v549
    %988 = vmatpush.xpose.msra.mxu0 %v533
    %989 = vmatpush.xpose.msra.mxu0 %v517
    %990 = vmatpush.xpose.msra.mxu0 %v501
    %991 = vmatpush.xpose.msra.mxu0 %v485
    %992 = vmatpush.xpose.msra.mxu0 %v469
    %993 = vmatpush.xpose.msra.mxu0 %v453
    %994 = vmatpush.xpose.msra.mxu0 %v437
    %995 = vmatpush.xpose.msra.mxu0 %v421
    %996 = vmatpush.xpose.msra.mxu0 %v405
    %997 = vmatpush.xpose.msra.mxu0 %v389
    %998 = vmatpush.xpose.msra.mxu0 %v373
    %999 = vmatmul.f32.gmra.mxu0 %v666
    %v1000 = vpop.f32.mrf.mxu0
    %v1001 = vadd.f32 %v981, %v1000
    %1002 = vdwg.mxu0
    %1003 = vst [vmem:[#allocation5] sm:$0x3] %v1001
    // Predicated region
    $region18: #{resnet_head_forward.1} parent=1 // pred_check
      _
    $region19: #{resnet_head_forward.1} parent=1 // pred_check_branch
      %1005 = sbr.rel (0) target = $region21
    $region20: #{resnet_head_forward.1} parent=1 // pred_region
      %1007 = vsyncadd [#allocation4], 0
      %s1009 = sshll.u32 [#allocation5], 4
      %s1010 = int_to_ptr.vmem [resolvable:$true] %s1009
      %s1011 = sshll.u32 %s3, 4
      %s1012 = int_to_ptr.hbm [resolvable:$true] %s1011
      %1014 = dma.vmem_to_hbm [thread:$0]  %s1010, 32, %s1012, [#allocation4]
    $region21: #{resnet_head_forward.1} parent=1 // pred_fallthru
      _
    // Predicated region
    $region22: #{resnet_head_forward.1} parent=1 // pred_check
      _
    $region23: #{resnet_head_forward.1} parent=1 // pred_check_branch
      %1016 = sbr.rel (0) target = $region25
    $region24: #{resnet_head_forward.1} parent=1 // pred_region
      %1018 = dma.done [#allocation4], 32
    $region25: #{resnet_head_forward.1} parent=1 // pred_fallthru
      _
    %1019 = vsyncpa [#allocation3], 1
    %1020 = vsyncpa [#allocation4], 1

</llo_original>
